<compile_context>
chip_gen: v7x
topology: tpu7x:2x2x1
jax: 0.10.0
libtpu: 0.0.40
codegen_flags: <defaults>
</compile_context>

<pallas_src>
import jax
import jax.numpy as jnp
from jax.experimental import pallas as pl
from jax.experimental.pallas import tpu as pltpu


def _round_up(x: int, m: int) -> int:
    return ((x + m - 1) // m) * m


# --------------------------------------------------------------------- kernels
def ffn_kernel_resident(x_ref, w1_ref, b1_ref, w2_ref, b2_ref, o_ref):
    """Weights fully VMEM-resident: single pass per row tile, no accumulator."""
    h = jnp.dot(x_ref[...], w1_ref[...], preferred_element_type=jnp.float32)
    h = jnp.maximum(h + b1_ref[...], 0.0)                 # bias + relu in f32
    # dropout (eval mode) == identity
    y = jnp.dot(h.astype(w2_ref.dtype), w2_ref[...],
                preferred_element_type=jnp.float32)
    o_ref[...] = (y + b2_ref[...]).astype(o_ref.dtype)


def ffn_kernel_chunked_f32out(x_ref, w1_ref, b1_ref, w2_ref, b2_ref, o_ref):
    """d_ffn chunked; accumulate straight into the f32, VMEM-resident output block."""
    j = pl.program_id(1)
    h = jnp.dot(x_ref[...], w1_ref[...], preferred_element_type=jnp.float32)
    h = jnp.maximum(h + b1_ref[...], 0.0)
    contrib = jnp.dot(h.astype(w2_ref.dtype), w2_ref[...],
                      preferred_element_type=jnp.float32)

    @pl.when(j == 0)
    def _():
        o_ref[...] = contrib + b2_ref[...]

    @pl.when(j > 0)
    def _():
        o_ref[...] += contrib


def ffn_kernel_chunked(x_ref, w1_ref, b1_ref, w2_ref, b2_ref, o_ref, acc_ref):
    """d_ffn chunked; f32 scratch accumulator (for non-f32 output dtypes)."""
    j = pl.program_id(1)

    @pl.when(j == 0)
    def _():
        acc_ref[...] = jnp.zeros_like(acc_ref)

    h = jnp.dot(x_ref[...], w1_ref[...], preferred_element_type=jnp.float32)
    h = jnp.maximum(h + b1_ref[...], 0.0)
    acc_ref[...] += jnp.dot(h.astype(w2_ref.dtype), w2_ref[...],
                            preferred_element_type=jnp.float32)

    @pl.when(j == pl.num_programs(1) - 1)
    def _():
        o_ref[...] = (acc_ref[...] + b2_ref[...]).astype(o_ref.dtype)


# -------------------------------------------------------------------- tuning
def _device_params():
    """(mxu_dim, tm_target, vmem_capacity_bytes) for the local TPU generation."""
    kind = ""
    try:
        kind = jax.devices()[0].device_kind.lower()
    except Exception:
        pass
    try:
        vmem_cap = int(pltpu.get_tpu_info().vmem_capacity_bytes)
    except Exception:
        vmem_cap = (64 if "v7" in kind else 128) * 1024 * 1024
    if "v5" in kind:
        mxu, tm_target = 128, 384        # ridge ~240 FLOP/B -> 256-384
    elif "v7" in kind:
        mxu, tm_target = 256, 512        # 64 MiB VMEM/TC, ridge ~311
    else:                                # v6e (and default): worst FLOP/byte ratio
        mxu, tm_target = 256, 768
    return mxu, tm_target, vmem_cap


def prepare_ffn_params(w1, b1, w2, b2, compute_dtype=jnp.bfloat16):
    """One-time cast + lane-alignment pad of the FFN weights.

    Call once at model load; doing this per forward call would re-read/re-write
    both weight matrices in HBM on every invocation.
    Weights are stored (in, out), i.e. transposed vs. torch.nn.Linear.weight."""
    d_model, d_ffn = w1.shape
    dm_pad, df_pad = _round_up(d_model, 128), _round_up(d_ffn, 128)

    def pad2(a, rows, cols, dt):
        a = a.astype(dt)
        if a.shape != (rows, cols):
            a = jnp.zeros((rows, cols), dt).at[:a.shape[0], :a.shape[1]].set(a)
        return a

    return dict(
        w1=pad2(w1, dm_pad, df_pad, compute_dtype),
        b1=pad2(b1.reshape(1, -1), 1, df_pad, jnp.float32),
        w2=pad2(w2, df_pad, dm_pad, compute_dtype),
        b2=pad2(b2.reshape(1, -1), 1, dm_pad, jnp.float32),
        d_model=d_model, d_ffn=d_ffn, dm_pad=dm_pad, df_pad=df_pad,
        compute_dtype=compute_dtype,
    )


# -------------------------------------------------------------------- forward
def feed_forward_block(x, params, *, _force_chunked=False, _tf=None):
    """x: (B, S, d_model); params from prepare_ffn_params()."""
    B, S, d_model = x.shape
    assert d_model == params["d_model"]
    d_ffn = params["d_ffn"]
    dm_pad, df_pad = params["dm_pad"], params["df_pad"]
    cdt = params["compute_dtype"]
    w1_p, b1_p, w2_p, b2_p = params["w1"], params["b1"], params["w2"], params["b2"]

    M = B * S
    out_dtype = x.dtype
    out_bytes = jnp.dtype(out_dtype).itemsize
    f32_out = out_dtype == jnp.float32
    acc_bytes = 0 if f32_out else 4

    mxu, tm_target, vmem_cap = _device_params()
    vmem_limit = min(int(0.85 * vmem_cap), 100 * 1024 * 1024)
    vmem_budget = vmem_limit - 8 * 1024 * 1024     # headroom for Mosaic scratch

    # -------- VMEM footprint models (double-buffered inputs/outputs) --------
    def reduction_bytes(tm, tf):
        return (2 * tm * dm_pad * 2                 # x tile (bf16)
                + 2 * 2 * dm_pad * tf * 2           # W1 + W2 chunks
                + 2 * (tf + dm_pad) * 4             # bias chunks
                + 2 * tm * dm_pad * out_bytes       # output tile
                + tm * dm_pad * acc_bytes)          # optional f32 scratch

    def resident_bytes(tm):
        return (2 * tm * dm_pad * 2
                + 2 * 2 * dm_pad * df_pad * 2       # full W1 + W2 resident
                + 2 * (df_pad + dm_pad) * 4
                + 2 * tm * dm_pad * out_bytes)

    # -------- row tile: clear the roofline ridge, stay inside VMEM ----------
    m_al = _round_up(M, 8)
    if m_al <= tm_target:
        tm_cands = [m_al]
    else:
        tm_cands = list(range(tm_target, mxu - 1, -mxu))   # e.g. 768, 512, 256
    tm = tm_cands[-1]
    for cand in tm_cands:
        if min(resident_bytes(cand), reduction_bytes(cand, 128)) <= vmem_budget:
            tm = cand
            break

    M_pad = _round_up(M, tm)
    grid_i = M_pad // tm

    # -------- x: cast / pad only when actually needed ------------------------
    x2 = x.reshape(M, d_model)
    if x2.dtype != cdt:
        x2 = x2.astype(cdt)
    if (M_pad, dm_pad) != (M, d_model):
        x2 = jnp.zeros((M_pad, dm_pad), cdt).at[:M, :d_model].set(x2)

    flops = 4 * M * d_model * d_ffn
    resident = (not _force_chunked) and resident_bytes(tm) <= vmem_budget

    if resident:
        # ---- weights-resident fast path: 1-D grid, no accumulator ----------
        cost = pl.CostEstimate(
            flops=flops, transcendentals=0,
            bytes_accessed=(M_pad * dm_pad * 2
                            + (w1_p.size + w2_p.size) * 2
                            + (b1_p.size + b2_p.size) * 4
                            + M_pad * dm_pad * out_bytes))
        out2d = pl.pallas_call(
            ffn_kernel_resident,
            out_shape=jax.ShapeDtypeStruct((M_pad, dm_pad), out_dtype),
            grid_spec=pltpu.PrefetchScalarGridSpec(
                num_scalar_prefetch=0,
                grid=(grid_i,),
                in_specs=[
                    pl.BlockSpec((tm, dm_pad), lambda i: (i, 0)),       # x row tile
                    pl.BlockSpec((dm_pad, df_pad), lambda i: (0, 0)),   # W1 (resident)
                    pl.BlockSpec((1, df_pad), lambda i: (0, 0)),        # b1
                    pl.BlockSpec((df_pad, dm_pad), lambda i: (0, 0)),   # W2 (resident)
                    pl.BlockSpec((1, dm_pad), lambda i: (0, 0)),        # b2
                ],
                out_specs=pl.BlockSpec((tm, dm_pad), lambda i: (i, 0)),
            ),
            compiler_params=pltpu.CompilerParams(
                dimension_semantics=("parallel",),
                vmem_limit_bytes=vmem_limit,
            ),
            cost_estimate=cost,
        )(x2, w1_p, b1_p, w2_p, b2_p)
    else:
        # ---- chunked reduction over d_ffn (reduction axis last) ------------
        tf = 128
        for cand in (1024, 512, 256, 128):
            if df_pad % cand == 0 and reduction_bytes(tm, cand) <= vmem_budget:
                tf = cand
                break
        if _tf is not None:
            assert df_pad % _tf == 0
            tf = _tf
        grid = (grid_i, df_pad // tf)

        cost = pl.CostEstimate(
            flops=flops, transcendentals=0,
            bytes_accessed=(M_pad * dm_pad * 2
                            + grid_i * (w1_p.size + w2_p.size) * 2   # re-streamed per row tile
                            + grid_i * (b1_p.size + b2_p.size) * 4
                            + M_pad * dm_pad * out_bytes))

        kernel = ffn_kernel_chunked_f32out if f32_out else ffn_kernel_chunked
        scratch = [] if f32_out else [pltpu.VMEM((tm, dm_pad), jnp.float32)]

        out2d = pl.pallas_call(
            kernel,
            out_shape=jax.ShapeDtypeStruct((M_pad, dm_pad), out_dtype),
            grid_spec=pltpu.PrefetchScalarGridSpec(
                num_scalar_prefetch=0,
                grid=grid,
                in_specs=[
                    pl.BlockSpec((tm, dm_pad), lambda i, j: (i, 0)),    # x row tile
                    pl.BlockSpec((dm_pad, tf), lambda i, j: (0, j)),    # W1 chunk
                    pl.BlockSpec((1, tf), lambda i, j: (0, j)),         # b1 chunk
                    pl.BlockSpec((tf, dm_pad), lambda i, j: (j, 0)),    # W2 chunk
                    pl.BlockSpec((1, dm_pad), lambda i, j: (0, 0)),     # b2
                ],
                out_specs=pl.BlockSpec((tm, dm_pad), lambda i, j: (i, 0)),
                scratch_shapes=scratch,
            ),
            compiler_params=pltpu.CompilerParams(
                dimension_semantics=("parallel", "arbitrary"),
                vmem_limit_bytes=vmem_limit,
            ),
            cost_estimate=cost,
        )(x2, w1_p, b1_p, w2_p, b2_p)

    return out2d[:M, :d_model].reshape(B, S, d_model)


# ----------------------------------------------------------------------- main
if __name__ == "__main__":
    # Small shapes consistent with the module: (batch, seq, d_model)
    batch, seq, d_model, d_ffn = 2, 8, 32, 64
    dropout_p = 0.1  # inference mode -> identity

    key = jax.random.PRNGKey(0)
    kx, kw1, kb1, kw2, kb2 = jax.random.split(key, 5)

    x = jax.random.normal(kx, (batch, seq, d_model), dtype=jnp.float32)
    # nn.Linear(d_model, d_ffn): weight (d_ffn, d_model) -> stored transposed here.
    w1 = jax.random.normal(kw1, (d_model, d_ffn), dtype=jnp.float32) * 0.05
    b1 = jax.random.normal(kb1, (d_ffn,), dtype=jnp.float32) * 0.05
    w2 = jax.random.normal(kw2, (d_ffn, d_model), dtype=jnp.float32) * 0.05
    b2 = jax.random.normal(kb2, (d_model,), dtype=jnp.float32) * 0.05

    bf = jnp.bfloat16

    def mixed_ref(x_, w1_, b1_, w2_, b2_):
        h = jnp.maximum(
            jnp.dot(x_.astype(bf), w1_.astype(bf),
                    preferred_element_type=jnp.float32) + b1_, 0.0)
        return jnp.dot(h.astype(bf), w2_.astype(bf),
                       preferred_element_type=jnp.float32) + b2_

    # --- 1) default path (weights-resident fast path at these shapes) --------
    params = prepare_ffn_params(w1, b1, w2, b2)
    out = feed_forward_block(x, params)
    out = jax.block_until_ready(out)
    assert out.shape == (batch, seq, d_model)

    ref = mixed_ref(x, w1, b1, w2, b2)
    assert jnp.allclose(out, ref, atol=5e-3, rtol=5e-3), "mismatch vs mixed-precision reference"

    ref_f32 = jnp.maximum(x @ w1 + b1, 0.0) @ w2 + b2
    assert jnp.allclose(out, ref_f32, atol=5e-2, rtol=5e-2), "mismatch vs f32 reference"

    # --- 2) chunked-reduction path (f32 output, accumulate into o_ref) -------
    d_ffn2 = 256
    w1b = jax.random.normal(kw1, (d_model, d_ffn2), dtype=jnp.float32) * 0.05
    b1b = jax.random.normal(kb1, (d_ffn2,), dtype=jnp.float32) * 0.05
    w2b = jax.random.normal(kw2, (d_ffn2, d_model), dtype=jnp.float32) * 0.05
    params2 = prepare_ffn_params(w1b, b1b, w2b, b2)
    out2 = jax.block_until_ready(
        feed_forward_block(x, params2, _force_chunked=True, _tf=128))
    ref2 = mixed_ref(x, w1b, b1b, w2b, b2)
    assert jnp.allclose(out2, ref2, atol=5e-3, rtol=5e-3), "chunked path mismatch"

    # --- 3) chunked-reduction path with narrow (bf16) output -> f32 scratch --
    out3 = jax.block_until_ready(
        feed_forward_block(x.astype(bf), params2, _force_chunked=True, _tf=128))
    assert out3.dtype == bf
    assert jnp.allclose(out3.astype(jnp.float32), ref2, atol=2e-2, rtol=2e-2), \
        "bf16-output chunked path mismatch"

    print("KERNEL_OK")
</pallas_src>

<mosaic_0001>
module attributes {stable_mosaic.version = 11 : i64} {
  func.func @ffn_kernel_resident(%arg0: i32, %arg1: memref<16x128xbf16, #tpu.memory_space<vmem>>, %arg2: memref<128x128xbf16, #tpu.memory_space<vmem>>, %arg3: memref<1x128xf32, #tpu.memory_space<vmem>>, %arg4: memref<128x128xbf16, #tpu.memory_space<vmem>>, %arg5: memref<1x128xf32, #tpu.memory_space<vmem>>, %arg6: memref<16x128xf32, #tpu.memory_space<vmem>>) attributes {dimension_semantics = [#tpu.dimension_semantics<parallel>], iteration_bounds = array<i64: 1>, scalar_prefetch = 0 : i64, scratch_operands = 0 : i64, tpu.core_type = #tpu.core_type<tc>, window_params = [{transform_indices = @transform_0, window_bounds = array<i64: 16, 128>}, {pipeline_mode = #tpu.pipeline_mode<synchronous>, transform_indices = @transform_1, window_bounds = array<i64: 128, 128>}, {pipeline_mode = #tpu.pipeline_mode<synchronous>, transform_indices = @transform_2, window_bounds = array<i64: 1, 128>}, {pipeline_mode = #tpu.pipeline_mode<synchronous>, transform_indices = @transform_3, window_bounds = array<i64: 128, 128>}, {pipeline_mode = #tpu.pipeline_mode<synchronous>, transform_indices = @transform_4, window_bounds = array<i64: 1, 128>}, {transform_indices = @transform_5, window_bounds = array<i64: 16, 128>}]} {
    %c0 = arith.constant 0 : index
    %c0_0 = arith.constant 0 : index
    %0 = vector.load %arg1[%c0, %c0_0] : memref<16x128xbf16, #tpu.memory_space<vmem>>, vector<16x128xbf16>
    %c0_1 = arith.constant 0 : index
    %c0_2 = arith.constant 0 : index
    %1 = vector.load %arg2[%c0_1, %c0_2] : memref<128x128xbf16, #tpu.memory_space<vmem>>, vector<128x128xbf16>
    %cst = arith.constant dense<0.000000e+00> : vector<16x128xf32>
    %2 = tpu.matmul %0, %1, %cst {dimension_numbers = #tpu.dot_dimension_numbers<[1], [0], [0], [1], [0, 0, 1, 1], [], []>} : vector<16x128xbf16>, vector<128x128xbf16>, vector<16x128xf32> -> vector<16x128xf32>
    %c0_3 = arith.constant 0 : index
    %c0_4 = arith.constant 0 : index
    %3 = vector.load %arg3[%c0_3, %c0_4] : memref<1x128xf32, #tpu.memory_space<vmem>>, vector<1x128xf32>
    %4 = vector.broadcast %3 : vector<1x128xf32> to vector<16x128xf32>
    %5 = arith.addf %2, %4 : vector<16x128xf32>
    %cst_5 = arith.constant 0.000000e+00 : f32
    %6 = vector.broadcast %cst_5 : f32 to vector<16x128xf32>
    %7 = arith.maximumf %5, %6 : vector<16x128xf32>
    %8 = arith.truncf %7 : vector<16x128xf32> to vector<16x128xbf16>
    %c0_6 = arith.constant 0 : index
    %c0_7 = arith.constant 0 : index
    %9 = vector.load %arg4[%c0_6, %c0_7] : memref<128x128xbf16, #tpu.memory_space<vmem>>, vector<128x128xbf16>
    %cst_8 = arith.constant dense<0.000000e+00> : vector<16x128xf32>
    %10 = tpu.matmul %8, %9, %cst_8 {dimension_numbers = #tpu.dot_dimension_numbers<[1], [0], [0], [1], [0, 0, 1, 1], [], []>} : vector<16x128xbf16>, vector<128x128xbf16>, vector<16x128xf32> -> vector<16x128xf32>
    %c0_9 = arith.constant 0 : index
    %c0_10 = arith.constant 0 : index
    %11 = vector.load %arg5[%c0_9, %c0_10] : memref<1x128xf32, #tpu.memory_space<vmem>>, vector<1x128xf32>
    %12 = vector.broadcast %11 : vector<1x128xf32> to vector<16x128xf32>
    %13 = arith.addf %10, %12 : vector<16x128xf32>
    %c0_11 = arith.constant 0 : index
    %c0_12 = arith.constant 0 : index
    %14 = vector.load %arg6[%c0_11, %c0_12] : memref<16x128xf32, #tpu.memory_space<vmem>>, vector<16x128xf32>
    tpu.vector_store %arg6[%c0_11, %c0_12], %13 {strides = array<i32>} : memref<16x128xf32, #tpu.memory_space<vmem>>, vector<16x128xf32>,
    return
  }
  func.func @transform_0(%arg0: i32) -> (i32, i32) {
    %c0_i32 = arith.constant 0 : i32
    %c0_i32_0 = arith.constant 0 : i32
    return %arg0, %c0_i32 : i32, i32
  }
  func.func @transform_1(%arg0: i32) -> (i32, i32) {
    %c0_i32 = arith.constant 0 : i32
    %c0_i32_0 = arith.constant 0 : i32
    %c0_i32_1 = arith.constant 0 : i32
    return %c0_i32, %c0_i32_0 : i32, i32
  }
  func.func @transform_2(%arg0: i32) -> (i32, i32) {
    %c0_i32 = arith.constant 0 : i32
    %c0_i32_0 = arith.constant 0 : i32
    %c0_i32_1 = arith.constant 0 : i32
    return %c0_i32, %c0_i32_0 : i32, i32
  }
  func.func @transform_3(%arg0: i32) -> (i32, i32) {
    %c0_i32 = arith.constant 0 : i32
    %c0_i32_0 = arith.constant 0 : i32
    %c0_i32_1 = arith.constant 0 : i32
    return %c0_i32, %c0_i32_0 : i32, i32
  }
  func.func @transform_4(%arg0: i32) -> (i32, i32) {
    %c0_i32 = arith.constant 0 : i32
    %c0_i32_0 = arith.constant 0 : i32
    %c0_i32_1 = arith.constant 0 : i32
    return %c0_i32, %c0_i32_0 : i32, i32
  }
  func.func @transform_5(%arg0: i32) -> (i32, i32) {
    %c0_i32 = arith.constant 0 : i32
    %c0_i32_0 = arith.constant 0 : i32
    return %arg0, %c0_i32 : i32, i32
  }
}

</mosaic_0001>

<llo_original>
// kernel: tpu_custom_call.1
$region0: #{tpu_custom_call.1}
  #allocation0 [shape = 'u32[]', space=smem, size = 0x4, offset = 0x4, fixed_abs, tag = 'smem constant byte address 0x4 - core index']
  #allocation1 [shape = 'u32[144,128]{1,0:T(1,128)}', space=vmem, size = 0x12000, scoped, tag = 'internal scratch']
  %s0 = inlined_call_operand.hbm [shape: bf16[16,128], index: 0, kind: input, shape index: {}]
  %s1 = inlined_call_operand.hbm [shape: bf16[128,128], index: 1, kind: input, shape index: {}]
  %s2 = inlined_call_operand.hbm [shape: f32[1,128], index: 2, kind: input, shape index: {}]
  %s3 = inlined_call_operand.hbm [shape: bf16[128,128], index: 3, kind: input, shape index: {}]
  %s4 = inlined_call_operand.hbm [shape: f32[1,128], index: 4, kind: input, shape index: {}]
  %s5 = inlined_call_operand.hbm [shape: f32[16,128], index: 5, kind: output, shape index: {}]
  %s6 = sld [smem:[#allocation0]]
  $region50: #{tpu_custom_call.1} parent=0
    _
  %s8 = ssub.s32 1, %s6
  %s9 = scalar_select 0, %s8, %s6
  $region1: #{tpu_custom_call.1} parent=0
    #allocation2 [shape = 'u8[4096]{0}', space=vmem, size = 0x1000, scoped, tag = 'input window, operand 0, single buffered']
    #allocation3 [shape = 's32[1]{0}', space=sflag, size = 0x4, scoped, tag = 'scoped memory for tpu_custom_call.1']
    #allocation4 [shape = 's32[1]{0}', space=sflag, size = 0x4, scoped, tag = 'scoped memory for tpu_custom_call.1']
    #allocation5 [shape = 'u8[32768]{0}', space=vmem, size = 0x8000, scoped, tag = 'input window, operand 1, single buffered']
    #allocation6 [shape = 's32[1]{0}', space=sflag, size = 0x4, scoped, tag = 'scoped memory for tpu_custom_call.1']
    #allocation7 [shape = 'u8[512]{0}', space=vmem, size = 0x400, scoped, tag = 'input window, operand 2, single buffered']
    #allocation8 [shape = 'u8[32768]{0}', space=vmem, size = 0x8000, scoped, tag = 'input window, operand 3, single buffered']
    #allocation9 [shape = 's32[1]{0}', space=sflag, size = 0x4, scoped, tag = 'scoped memory for tpu_custom_call.1']
    #allocation10 [shape = 'u8[512]{0}', space=vmem, size = 0x400, scoped, tag = 'input window, operand 4, single buffered']
    #allocation11 [shape = 'u8[8192]{0}', space=vmem, size = 0x2000, scoped, tag = 'output window, operand 0, single buffered']
    %10 = vsyncpa [#allocation3], 0
    %11 = vsyncpa [#allocation6], 0
    %12 = vsyncpa [#allocation9], 0
    %13 = vsyncpa [#allocation4], 0
    // Predicated region
    $region2: #{tpu_custom_call.1} parent=1 // pred_check
      _
    $region3: #{tpu_custom_call.1} parent=1 // pred_check_branch
      %15 = sbr.rel (0) target = $region5
    $region4: #{tpu_custom_call.1} parent=1 // pred_region
      %s17 = ssub.s32 128, 128
      %18 = vsyncadd [#allocation3], %s17
      %s19 = sshll.u32 [#allocation2], 4
      %s20 = int_to_ptr.vmem [resolvable:$true] %s19
      %25 = dma.hbm_to_vmem [thread:$0]  %s0, 128, %s20, [#allocation3], 64, 64, 4
    $region5: #{tpu_custom_call.1} parent=1 // pred_fallthru
      _
    // Predicated region
    $region6: #{tpu_custom_call.1} parent=1 // pred_check
      _
    $region7: #{tpu_custom_call.1} parent=1 // pred_check_branch
      %27 = sbr.rel (0) target = $region9
    $region8: #{tpu_custom_call.1} parent=1 // pred_region
      %s29 = ssub.s32 1024, 1024
      %30 = vsyncadd [#allocation6], %s29
      %s31 = sshll.u32 [#allocation5], 4
      %s32 = int_to_ptr.vmem [resolvable:$true] %s31
      %37 = dma.hbm_to_vmem [thread:$0]  %s1, 1024, %s32, [#allocation6], 64, 64, 4
    $region9: #{tpu_custom_call.1} parent=1 // pred_fallthru
      _
    // Predicated region
    $region10: #{tpu_custom_call.1} parent=1 // pred_check
      _
    $region11: #{tpu_custom_call.1} parent=1 // pred_check_branch
      %39 = sbr.rel (0) target = $region13
    $region12: #{tpu_custom_call.1} parent=1 // pred_region
      %s41 = ssub.s32 16, 16
      %42 = vsyncadd [#allocation6], %s41
      %s44 = sshll.u32 [#allocation7], 4
      %s45 = int_to_ptr.vmem [resolvable:$true] %s44
      %47 = dma.hbm_to_vmem [thread:$0]  %s2, 16, %s45, [#allocation6]
    $region13: #{tpu_custom_call.1} parent=1 // pred_fallthru
      _
    // Predicated region
    $region14: #{tpu_custom_call.1} parent=1 // pred_check
      _
    $region15: #{tpu_custom_call.1} parent=1 // pred_check_branch
      %49 = sbr.rel (0) target = $region17
    $region16: #{tpu_custom_call.1} parent=1 // pred_region
      %s51 = ssub.s32 1024, 1024
      %52 = vsyncadd [#allocation9], %s51
      %s53 = sshll.u32 [#allocation8], 4
      %s54 = int_to_ptr.vmem [resolvable:$true] %s53
      %59 = dma.hbm_to_vmem [thread:$0]  %s3, 1024, %s54, [#allocation9], 64, 64, 4
    $region17: #{tpu_custom_call.1} parent=1 // pred_fallthru
      _
    // Predicated region
    $region18: #{tpu_custom_call.1} parent=1 // pred_check
      _
    $region19: #{tpu_custom_call.1} parent=1 // pred_check_branch
      %61 = sbr.rel (0) target = $region21
    $region20: #{tpu_custom_call.1} parent=1 // pred_region
      %s63 = ssub.s32 16, 16
      %64 = vsyncadd [#allocation9], %s63
      %s66 = sshll.u32 [#allocation10], 4
      %s67 = int_to_ptr.vmem [resolvable:$true] %s66
      %69 = dma.hbm_to_vmem [thread:$0]  %s4, 16, %s67, [#allocation9]
    $region21: #{tpu_custom_call.1} parent=1 // pred_fallthru
      _
    // Predicated region
    $region22: #{tpu_custom_call.1} parent=1 // pred_check
      _
    $region23: #{tpu_custom_call.1} parent=1 // pred_check_branch
      %71 = sbr.rel (0) target = $region25
    $region24: #{tpu_custom_call.1} parent=1 // pred_region
      %72 = dma.done [#allocation3], 128
    $region25: #{tpu_custom_call.1} parent=1 // pred_fallthru
      _
    // Predicated region
    $region26: #{tpu_custom_call.1} parent=1 // pred_check
      _
    $region27: #{tpu_custom_call.1} parent=1 // pred_check_branch
      %74 = sbr.rel (0) target = $region29
    $region28: #{tpu_custom_call.1} parent=1 // pred_region
      %75 = dma.done [#allocation6], 1024
    $region29: #{tpu_custom_call.1} parent=1 // pred_fallthru
      _
    // Predicated region
    $region30: #{tpu_custom_call.1} parent=1 // pred_check
      _
    $region31: #{tpu_custom_call.1} parent=1 // pred_check_branch
      %77 = sbr.rel (0) target = $region33
    $region32: #{tpu_custom_call.1} parent=1 // pred_region
      %78 = dma.done [#allocation6], 16
    $region33: #{tpu_custom_call.1} parent=1 // pred_fallthru
      _
    // Predicated region
    $region34: #{tpu_custom_call.1} parent=1 // pred_check
      _
    $region35: #{tpu_custom_call.1} parent=1 // pred_check_branch
      %80 = sbr.rel (0) target = $region37
    $region36: #{tpu_custom_call.1} parent=1 // pred_region
      %81 = dma.done [#allocation9], 1024
    $region37: #{tpu_custom_call.1} parent=1 // pred_fallthru
      _
    // Predicated region
    $region38: #{tpu_custom_call.1} parent=1 // pred_check
      _
    $region39: #{tpu_custom_call.1} parent=1 // pred_check_branch
      %83 = sbr.rel (0) target = $region41
    $region40: #{tpu_custom_call.1} parent=1 // pred_region
      %84 = dma.done [#allocation9], 16
    $region41: #{tpu_custom_call.1} parent=1 // pred_fallthru
      _
    %v86 = vld [vmem:[#allocation2] sm:$0xf]
    %v87 = vld [vmem:[#allocation2 + $0x4] sm:$0xf]
    %v88 = vld [vmem:[#allocation5] sm:$0xf]
    %v89 = vld [vmem:[#allocation5 + $0x4] sm:$0xf]
    %v90 = vld [vmem:[#allocation5 + $0x8] sm:$0xf]
    %v91 = vld [vmem:[#allocation5 + $0xc] sm:$0xf]
    %v92 = vld [vmem:[#allocation5 + $0x10] sm:$0xf]
    %v93 = vld [vmem:[#allocation5 + $0x14] sm:$0xf]
    %v94 = vld [vmem:[#allocation5 + $0x18] sm:$0xf]
    %v95 = vld [vmem:[#allocation5 + $0x1c] sm:$0xf]
    %v96 = vld [vmem:[#allocation5 + $0x20] sm:$0xf]
    %v97 = vld [vmem:[#allocation5 + $0x24] sm:$0xf]
    %v98 = vld [vmem:[#allocation5 + $0x28] sm:$0xf]
    %v99 = vld [vmem:[#allocation5 + $0x2c] sm:$0xf]
    %v100 = vld [vmem:[#allocation5 + $0x30] sm:$0xf]
    %v101 = vld [vmem:[#allocation5 + $0x34] sm:$0xf]
    %v102 = vld [vmem:[#allocation5 + $0x38] sm:$0xf]
    %v103 = vld [vmem:[#allocation5 + $0x3c] sm:$0xf]
    %v104 = vld [vmem:[#allocation7] sm:$0x1]
    %v106 = vlaneseq
    %v107 = vshrl.u32 %v106, 7
    %v108 = vsub.s32 0, %v107
    %v109 = vrot.slane %v104, %v108
    %v113 = vunpack.c.l.b16 %v86
    %v114 = vunpack.c.l.b16 %v87
    %v115 = vpack.c.b16 %v114, %v113
    %v133 = vunpack.c.l.b16 %v88
    %v134 = vunpack.c.l.b16 %v89
    %v135 = vunpack.c.l.b16 %v90
    %v136 = vunpack.c.l.b16 %v91
    %v137 = vunpack.c.l.b16 %v92
    %v138 = vunpack.c.l.b16 %v93
    %v139 = vunpack.c.l.b16 %v94
    %v140 = vunpack.c.l.b16 %v95
    %v141 = vunpack.c.l.b16 %v96
    %v142 = vunpack.c.l.b16 %v97
    %v143 = vunpack.c.l.b16 %v98
    %v144 = vunpack.c.l.b16 %v99
    %v145 = vunpack.c.l.b16 %v100
    %v146 = vunpack.c.l.b16 %v101
    %v147 = vunpack.c.l.b16 %v102
    %v148 = vunpack.c.l.b16 %v103
    %v149 = vpack.c.b16 %v134, %v133
    %v150 = vpack.c.b16 %v136, %v135
    %v151 = vpack.c.b16 %v138, %v137
    %v152 = vpack.c.b16 %v140, %v139
    %v153 = vpack.c.b16 %v142, %v141
    %v154 = vpack.c.b16 %v144, %v143
    %v155 = vpack.c.b16 %v146, %v145
    %v156 = vpack.c.b16 %v148, %v147
    %165 = vmatprep.subr.bf16.mxu0 0
    %166 = vmatpush1.bf16.msra.mxu0 %v149
    %167 = vmatprep.subr.bf16.mxu0 0
    %168 = vmatpush1.bf16.msra.mxu0 %v150
    %169 = vmatprep.subr.bf16.mxu0 0
    %170 = vmatpush1.bf16.msra.mxu0 %v151
    %171 = vmatprep.subr.bf16.mxu0 0
    %172 = vmatpush1.bf16.msra.mxu0 %v152
    %173 = vmatprep.subr.bf16.mxu0 0
    %174 = vmatpush1.bf16.msra.mxu0 %v153
    %175 = vmatprep.subr.bf16.mxu0 0
    %176 = vmatpush1.bf16.msra.mxu0 %v154
    %177 = vmatprep.subr.bf16.mxu0 0
    %178 = vmatpush1.bf16.msra.mxu0 %v155
    %179 = vmatprep.subr.bf16.mxu0 0
    %180 = vmatpush1.bf16.msra.mxu0 %v156
    %181 = vmatprep.subr.bf16.mxu0 0
    %182 = vmatpush1.bf16.msra.mxu0 0
    %183 = vmatprep.subr.bf16.mxu0 0
    %184 = vmatpush1.bf16.msra.mxu0 0
    %185 = vmatprep.subr.bf16.mxu0 0
    %186 = vmatpush1.bf16.msra.mxu0 0
    %187 = vmatprep.subr.bf16.mxu0 0
    %188 = vmatpush1.bf16.msra.mxu0 0
    %189 = vmatprep.subr.bf16.mxu0 0
    %190 = vmatpush1.bf16.msra.mxu0 0
    %191 = vmatprep.subr.bf16.mxu0 0
    %192 = vmatpush1.bf16.msra.mxu0 0
    %193 = vmatprep.subr.bf16.mxu0 0
    %194 = vmatpush1.bf16.msra.mxu0 0
    %195 = vmatprep.subr.bf16.mxu0 0
    %196 = vmatpush1.bf16.msra.mxu0 0
    %197 = vmatprep.mubr.bf16.mxu0 0
    %198 = vmatmul.mubr.bf16.gmra.mrb[0].mxu0 %v115
    %v199 = vpop.f32.mrb[0].mxu0
    %v200 = vadd.f32 %v109, %v199
    %v201 = vpop.f32.mrb[0].mxu0
    %v202 = vpop.f32.mrb[0].mxu0
    %v203 = vadd.f32 %v109, %v202
    %v204 = vpop.f32.mrb[0].mxu0
    %205 = vdwg.mxu0
    %v206 = vmax.f32 %v200, 0.0
    %v207 = vmax.f32 %v203, 0.0
    %v208 = vpack.c.bf16 %v207, %v206
    %v209 = vld [vmem:[#allocation8] sm:$0xf]
    %v210 = vld [vmem:[#allocation8 + $0x4] sm:$0xf]
    %v211 = vld [vmem:[#allocation8 + $0x8] sm:$0xf]
    %v212 = vld [vmem:[#allocation8 + $0xc] sm:$0xf]
    %v213 = vld [vmem:[#allocation8 + $0x10] sm:$0xf]
    %v214 = vld [vmem:[#allocation8 + $0x14] sm:$0xf]
    %v215 = vld [vmem:[#allocation8 + $0x18] sm:$0xf]
    %v216 = vld [vmem:[#allocation8 + $0x1c] sm:$0xf]
    %v217 = vld [vmem:[#allocation8 + $0x20] sm:$0xf]
    %v218 = vld [vmem:[#allocation8 + $0x24] sm:$0xf]
    %v219 = vld [vmem:[#allocation8 + $0x28] sm:$0xf]
    %v220 = vld [vmem:[#allocation8 + $0x2c] sm:$0xf]
    %v221 = vld [vmem:[#allocation8 + $0x30] sm:$0xf]
    %v222 = vld [vmem:[#allocation8 + $0x34] sm:$0xf]
    %v223 = vld [vmem:[#allocation8 + $0x38] sm:$0xf]
    %v224 = vld [vmem:[#allocation8 + $0x3c] sm:$0xf]
    %v225 = vld [vmem:[#allocation10] sm:$0x1]
    %v227 = vlaneseq
    %v228 = vshrl.u32 %v227, 7
    %v229 = vsub.s32 0, %v228
    %v230 = vrot.slane %v225, %v229
    %v248 = vunpack.c.l.b16 %v209
    %v249 = vunpack.c.l.b16 %v210
    %v250 = vunpack.c.l.b16 %v211
    %v251 = vunpack.c.l.b16 %v212
    %v252 = vunpack.c.l.b16 %v213
    %v253 = vunpack.c.l.b16 %v214
    %v254 = vunpack.c.l.b16 %v215
    %v255 = vunpack.c.l.b16 %v216
    %v256 = vunpack.c.l.b16 %v217
    %v257 = vunpack.c.l.b16 %v218
    %v258 = vunpack.c.l.b16 %v219
    %v259 = vunpack.c.l.b16 %v220
    %v260 = vunpack.c.l.b16 %v221
    %v261 = vunpack.c.l.b16 %v222
    %v262 = vunpack.c.l.b16 %v223
    %v263 = vunpack.c.l.b16 %v224
    %v264 = vpack.c.b16 %v249, %v248
    %v265 = vpack.c.b16 %v251, %v250
    %v266 = vpack.c.b16 %v253, %v252
    %v267 = vpack.c.b16 %v255, %v254
    %v268 = vpack.c.b16 %v257, %v256
    %v269 = vpack.c.b16 %v259, %v258
    %v270 = vpack.c.b16 %v261, %v260
    %v271 = vpack.c.b16 %v263, %v262
    %280 = vmatprep.subr.bf16.mxu0 0
    %281 = vmatpush1.bf16.msra.mxu0 %v264
    %282 = vmatprep.subr.bf16.mxu0 0
    %283 = vmatpush1.bf16.msra.mxu0 %v265
    %284 = vmatprep.subr.bf16.mxu0 0
    %285 = vmatpush1.bf16.msra.mxu0 %v266
    %286 = vmatprep.subr.bf16.mxu0 0
    %287 = vmatpush1.bf16.msra.mxu0 %v267
    %288 = vmatprep.subr.bf16.mxu0 0
    %289 = vmatpush1.bf16.msra.mxu0 %v268
    %290 = vmatprep.subr.bf16.mxu0 0
    %291 = vmatpush1.bf16.msra.mxu0 %v269
    %292 = vmatprep.subr.bf16.mxu0 0
    %293 = vmatpush1.bf16.msra.mxu0 %v270
    %294 = vmatprep.subr.bf16.mxu0 0
    %295 = vmatpush1.bf16.msra.mxu0 %v271
    %296 = vmatprep.subr.bf16.mxu0 0
    %297 = vmatpush1.bf16.msra.mxu0 0
    %298 = vmatprep.subr.bf16.mxu0 0
    %299 = vmatpush1.bf16.msra.mxu0 0
    %300 = vmatprep.subr.bf16.mxu0 0
    %301 = vmatpush1.bf16.msra.mxu0 0
    %302 = vmatprep.subr.bf16.mxu0 0
    %303 = vmatpush1.bf16.msra.mxu0 0
    %304 = vmatprep.subr.bf16.mxu0 0
    %305 = vmatpush1.bf16.msra.mxu0 0
    %306 = vmatprep.subr.bf16.mxu0 0
    %307 = vmatpush1.bf16.msra.mxu0 0
    %308 = vmatprep.subr.bf16.mxu0 0
    %309 = vmatpush1.bf16.msra.mxu0 0
    %310 = vmatprep.subr.bf16.mxu0 0
    %311 = vmatpush1.bf16.msra.mxu0 0
    %312 = vmatprep.mubr.bf16.mxu0 0
    %313 = vmatmul.mubr.bf16.gmra.mrb[0].mxu0 %v208
    %v314 = vpop.f32.mrb[0].mxu0
    %v315 = vadd.f32 %v230, %v314
    %v316 = vpop.f32.mrb[0].mxu0
    %v317 = vpop.f32.mrb[0].mxu0
    %v318 = vadd.f32 %v230, %v317
    %v319 = vpop.f32.mrb[0].mxu0
    %320 = vdwg.mxu0
    %321 = vst [vmem:[#allocation11] sm:$0xff] %v315
    %322 = vst [vmem:[#allocation11 + $0x8] sm:$0xff] %v318
    // Predicated region
    $region42: #{tpu_custom_call.1} parent=1 // pred_check
      _
    $region43: #{tpu_custom_call.1} parent=1 // pred_check_branch
      %324 = sbr.rel (0) target = $region45
    $region44: #{tpu_custom_call.1} parent=1 // pred_region
      %s326 = ssub.s32 256, 256
      %327 = vsyncadd [#allocation4], %s326
      %s328 = sshll.u32 [#allocation11], 4
      %s329 = int_to_ptr.vmem [resolvable:$true] %s328
      %334 = dma.vmem_to_hbm [thread:$0]  %s329, 256, %s5, [#allocation4], 128, 128, 8
    $region45: #{tpu_custom_call.1} parent=1 // pred_fallthru
      _
    // Predicated region
    $region46: #{tpu_custom_call.1} parent=1 // pred_check
      _
    $region47: #{tpu_custom_call.1} parent=1 // pred_check_branch
      %336 = sbr.rel (0) target = $region49
    $region48: #{tpu_custom_call.1} parent=1 // pred_region
      %337 = dma.done [#allocation4], 256
    $region49: #{tpu_custom_call.1} parent=1 // pred_fallthru
      _
    %338 = vsyncpa [#allocation3], 1
    %339 = vsyncpa [#allocation6], 1
    %340 = vsyncpa [#allocation9], 1
    %341 = vsyncpa [#allocation4], 1

</llo_original>
